<compile_context>
chip_gen: v7x
topology: tpu7x:2x2x1
jax: 0.10.0
libtpu: 0.0.40
codegen_flags: <defaults>
</compile_context>

<pallas_src>
import jax
import jax.numpy as jnp
from jax import lax
from jax.experimental import pallas as pl
from jax.experimental.pallas import tpu as pltpu

EPS = 1e-5  # BatchNorm eps


# --------------------------------------------------------------------------
# Kernels: bf16 matmul into an f32 accumulator, f32 epilogue (bias / residual
# / ReLU), lane-dense (128-padded channel) output.
# --------------------------------------------------------------------------
def _conv_bn_relu_kernel(p_ref, w_ref, b_ref, o_ref, acc_ref):
    # p_ref: (TM, TK) bf16 patches   w_ref: (TK, Cp) bf16 folded weights
    # b_ref: (1, Cp) f32 folded bias o_ref: (TM, Cp) output
    k = pl.program_id(2)

    @pl.when(k == 0)
    def _():
        acc_ref[...] = jnp.zeros_like(acc_ref)

    acc_ref[...] += jnp.dot(p_ref[...], w_ref[...],
                            preferred_element_type=jnp.float32)

    @pl.when(k == pl.num_programs(2) - 1)
    def _():
        o_ref[...] = jnp.maximum(acc_ref[...] + b_ref[...], 0.0).astype(o_ref.dtype)


def _conv_bn_add_relu_kernel(p_ref, w_ref, b_ref, res_ref, o_ref, acc_ref):
    # Same as above plus the f32 residual add before the final ReLU.
    k = pl.program_id(2)

    @pl.when(k == 0)
    def _():
        acc_ref[...] = jnp.zeros_like(acc_ref)

    acc_ref[...] += jnp.dot(p_ref[...], w_ref[...],
                            preferred_element_type=jnp.float32)

    @pl.when(k == pl.num_programs(2) - 1)
    def _():
        o_ref[...] = jnp.maximum(
            acc_ref[...] + b_ref[...] + res_ref[...], 0.0).astype(o_ref.dtype)


# --------------------------------------------------------------------------
# Wrapper-side glue (HBM-resident, plain JAX)
# --------------------------------------------------------------------------
def _round_up(x, m):
    return (x + m - 1) // m * m


def _pick_k_tile(k):
    # K padded to a multiple of 128; split into <=1024-wide tiles to bound
    # per-step VMEM (matters for v7x's 64 MiB once Cin grows).
    kp = _round_up(k, 128)
    if kp <= 1024:
        return kp, kp
    tk = 1024
    return _round_up(kp, tk), tk


def _single_buffered_spec(block_shape, index_map):
    # Constant-index operand: a single VMEM buffer suffices (no re-DMA across
    # grid steps).  Fall back to the default spec if pipeline_mode is not
    # supported by the installed JAX.
    try:
        return pl.BlockSpec(block_shape, index_map, pipeline_mode=pl.Buffered(1))
    except Exception:  # pragma: no cover
        return pl.BlockSpec(block_shape, index_map)


def _im2col_3x3(x_nhwc):
    # (n, H, W, C) -> (n, H*W, 9*C); taps ordered kh*3+kw, channels minor.
    n, h, w, c = x_nhwc.shape
    xp = jnp.pad(x_nhwc, ((0, 0), (1, 1), (1, 1), (0, 0)))
    taps = [xp[:, kh:kh + h, kw:kw + w, :] for kh in range(3) for kw in range(3)]
    return jnp.concatenate(taps, axis=-1).reshape(n, h * w, 9 * c)


def _fold_bn(w_oihw, gamma, beta, mean, var):
    # Fold BN (running-stats) scale into the conv weights.
    # Returns ((9*Cin, Cout) f32 weight, (Cout,) f32 bias).
    cout, cin = w_oihw.shape[0], w_oihw.shape[1]
    s = gamma / jnp.sqrt(var + EPS)
    w = jnp.transpose(w_oihw, (2, 3, 1, 0)).reshape(9 * cin, cout) * s[None, :]
    b = beta - mean * s
    return w.astype(jnp.float32), b.astype(jnp.float32)


def _matmul_bias_act(kernel_fn, patches, w, bias, extra, tm, tk, out_dtype):
    # patches: (n, M, Kp) bf16, w: (Kp, Cp) bf16, bias: (1, Cp) f32,
    # extra (residual): (n, M, Cp) f32 or None.
    n, m_total, kp = patches.shape
    cp = w.shape[1]
    m_tiles = m_total // tm
    k_tiles = kp // tk

    if k_tiles == 1:
        w_spec = _single_buffered_spec((tk, cp), lambda b, m, k: (0, 0))
    else:
        w_spec = pl.BlockSpec((tk, cp), lambda b, m, k: (k, 0))

    in_specs = [
        pl.BlockSpec((None, tm, tk), lambda b, m, k: (b, m, k)),
        w_spec,
        _single_buffered_spec((1, cp), lambda b, m, k: (0, 0)),
    ]
    args = [patches, w, bias]
    if extra is not None:
        in_specs.append(pl.BlockSpec((None, tm, cp), lambda b, m, k: (b, m, 0)))
        args.append(extra)

    return pl.pallas_call(
        kernel_fn,
        out_shape=jax.ShapeDtypeStruct((n, m_total, cp), out_dtype),
        grid_spec=pltpu.PrefetchScalarGridSpec(
            num_scalar_prefetch=0,
            grid=(n, m_tiles, k_tiles),
            in_specs=in_specs,
            out_specs=pl.BlockSpec((None, tm, cp), lambda b, m, k: (b, m, 0)),
            scratch_shapes=[pltpu.VMEM((tm, cp), jnp.float32)],
        ),
        compiler_params=pltpu.CompilerParams(
            dimension_semantics=("parallel", "parallel", "arbitrary"),
            vmem_limit_bytes=64 * 1024 * 1024),
    )(*args)


def basic_block(x_nchw, w1, g1, b1, m1, v1, w2, g2, b2, m2, v2):
    n, cin, h, w_sp = x_nchw.shape
    cout = w1.shape[0]
    assert cin == cout, "residual add requires in_size == out_size (stride=1)"
    hw = h * w_sp
    cp = _round_up(cout, 128)

    # Row tile: big enough to feed the MXU / hide grid-step overhead, bounded
    # so per-step VMEM stays small; pad HW up to a multiple of it.
    tm = min(_round_up(hw, 128), 512)
    hw_pad = _round_up(hw, tm)

    x_nhwc = jnp.transpose(x_nchw, (0, 2, 3, 1)).astype(jnp.float32)   # (n,H,W,Cin)

    # ---- conv1 + BN1 + ReLU ------------------------------------------------
    k1 = 9 * cin
    k1p, tk1 = _pick_k_tile(k1)
    p1 = _im2col_3x3(x_nhwc.astype(jnp.bfloat16))                      # (n,HW,9Cin) bf16
    p1 = jnp.pad(p1, ((0, 0), (0, hw_pad - hw), (0, k1p - k1)))
    w1f, bias1 = _fold_bn(w1, g1, b1, m1, v1)
    w1f = jnp.pad(w1f.astype(jnp.bfloat16), ((0, k1p - k1), (0, cp - cout)))
    bias1 = jnp.pad(bias1, (0, cp - cout)).reshape(1, cp)

    # y1 only feeds conv2's MXU -> emit in bf16 to halve its HBM traffic.
    y1 = _matmul_bias_act(_conv_bn_relu_kernel, p1, w1f, bias1, None,
                          tm, tk1, jnp.bfloat16)                       # (n,HWp,Cp)

    # ---- conv2 + BN2 + residual + ReLU --------------------------------------
    # Slice y1 back to the real rows/channels before im2col so conv2's K is
    # 9*Cout (padded), not 9*Cp.
    y1s = y1[:, :hw, :cout].reshape(n, h, w_sp, cout)                  # bf16
    c2in = w2.shape[1]
    k2 = 9 * c2in
    k2p, tk2 = _pick_k_tile(k2)
    p2 = _im2col_3x3(y1s)                                              # (n,HW,9Cout) bf16
    p2 = jnp.pad(p2, ((0, 0), (0, hw_pad - hw), (0, k2p - k2)))
    w2f, bias2 = _fold_bn(w2, g2, b2, m2, v2)
    w2f = jnp.pad(w2f.astype(jnp.bfloat16), ((0, k2p - k2), (0, cp - cout)))
    bias2 = jnp.pad(bias2, (0, cp - cout)).reshape(1, cp)

    # Residual kept in f32 (accuracy of the skip path); only zero-padded.
    xres = jnp.pad(x_nhwc.reshape(n, hw, cin),
                   ((0, 0), (0, hw_pad - hw), (0, cp - cin)))

    out = _matmul_bias_act(_conv_bn_add_relu_kernel, p2, w2f, bias2, xres,
                           tm, tk2, jnp.float32)

    out = out[:, :hw, :cout].reshape(n, h, w_sp, cout)
    return jnp.transpose(out, (0, 3, 1, 2)).astype(x_nchw.dtype)       # NCHW


# --------------------------------------------------------------------------
# Pure-JAX f32 reference (inference-mode BatchNorm)
# --------------------------------------------------------------------------
def _reference(x, w1, g1, b1, m1, v1, w2, g2, b2, m2, v2):
    def conv_bn(t, w, g, b, m, v):
        y = lax.conv_general_dilated(
            t, w, window_strides=(1, 1), padding=((1, 1), (1, 1)),
            dimension_numbers=("NCHW", "OIHW", "NCHW"))
        y = (y - m[None, :, None, None]) / jnp.sqrt(v[None, :, None, None] + EPS)
        return y * g[None, :, None, None] + b[None, :, None, None]

    y = jnp.maximum(conv_bn(x, w1, g1, b1, m1, v1), 0.0)
    y = conv_bn(y, w2, g2, b2, m2, v2)
    return jnp.maximum(y + x, 0.0)


if __name__ == "__main__":
    key = jax.random.PRNGKey(0)
    ks = jax.random.split(key, 11)

    N, C, H, W = 2, 4, 16, 16

    x = jax.random.normal(ks[0], (N, C, H, W), dtype=jnp.float32)
    w1 = jax.random.normal(ks[1], (C, C, 3, 3), dtype=jnp.float32) * 0.1
    g1 = jax.random.uniform(ks[2], (C,), jnp.float32, 0.5, 1.5)
    b1 = jax.random.normal(ks[3], (C,), dtype=jnp.float32) * 0.1
    m1 = jax.random.normal(ks[4], (C,), dtype=jnp.float32) * 0.1
    v1 = jax.random.uniform(ks[5], (C,), jnp.float32, 0.5, 1.5)
    w2 = jax.random.normal(ks[6], (C, C, 3, 3), dtype=jnp.float32) * 0.1
    g2 = jax.random.uniform(ks[7], (C,), jnp.float32, 0.5, 1.5)
    b2 = jax.random.normal(ks[8], (C,), dtype=jnp.float32) * 0.1
    m2 = jax.random.normal(ks[9], (C,), dtype=jnp.float32) * 0.1
    v2 = jax.random.uniform(ks[10], (C,), jnp.float32, 0.5, 1.5)

    out = basic_block(x, w1, g1, b1, m1, v1, w2, g2, b2, m2, v2)
    out = jax.block_until_ready(out)

    ref = _reference(x, w1, g1, b1, m1, v1, w2, g2, b2, m2, v2)
    assert out.shape == (N, C, H, W), out.shape
    # bf16 MXU operands -> looser tolerance than the old f32 path.
    max_err = float(jnp.max(jnp.abs(out - ref)))
    mean_err = float(jnp.mean(jnp.abs(out - ref)))
    assert max_err < 2e-1 and mean_err < 2e-2, (max_err, mean_err)

    print("KERNEL_OK")
</pallas_src>

<mosaic_0001>
module attributes {stable_mosaic.version = 11 : i64} {
  func.func @_conv_bn_relu_kernel(%arg0: i32, %arg1: i32, %arg2: i32, %arg3: memref<1x256x128xbf16, #tpu.memory_space<vmem>>, %arg4: memref<128x128xbf16, #tpu.memory_space<vmem>>, %arg5: memref<1x128xf32, #tpu.memory_space<vmem>>, %arg6: memref<1x256x128xbf16, #tpu.memory_space<vmem>>, %arg7: memref<256x128xf32, #tpu.memory_space<vmem>>) attributes {dimension_semantics = [#tpu.dimension_semantics<parallel>, #tpu.dimension_semantics<parallel>, #tpu.dimension_semantics<arbitrary>], iteration_bounds = array<i64: 2, 1, 1>, scalar_prefetch = 0 : i64, scratch_operands = 1 : i64, tpu.core_type = #tpu.core_type<tc>, window_params = [{transform_indices = @transform_0, window_bounds = array<i64: 1, 256, 128>}, {pipeline_mode = #tpu.pipeline_mode<synchronous>, transform_indices = @transform_1, window_bounds = array<i64: 128, 128>}, {pipeline_mode = #tpu.pipeline_mode<synchronous>, transform_indices = @transform_2, window_bounds = array<i64: 1, 128>}, {transform_indices = @transform_3, window_bounds = array<i64: 1, 256, 128>}]} {
    %c0_i32 = arith.constant 0 : i32
    %0 = arith.cmpi eq, %arg2, %c0_i32 : i32
    %1 = arith.extui %0 : i1 to i32
    %c0_i32_0 = arith.constant 0 : i32
    %2 = arith.cmpi ne, %1, %c0_i32_0 : i32
    scf.if %2 {
      %cst_11 = arith.constant 0.000000e+00 : f32
      %13 = vector.broadcast %cst_11 : f32 to vector<256x128xf32>
      %c0_12 = arith.constant 0 : index
      %c0_13 = arith.constant 0 : index
      %14 = vector.load %arg7[%c0_12, %c0_13] : memref<256x128xf32, #tpu.memory_space<vmem>>, vector<256x128xf32>
      tpu.vector_store %arg7[%c0_12, %c0_13], %13 {strides = array<i32>} : memref<256x128xf32, #tpu.memory_space<vmem>>, vector<256x128xf32>,
    } else {
    }
    %c0 = arith.constant 0 : index
    %c0_1 = arith.constant 0 : index
    %3 = vector.load %arg7[%c0, %c0_1] : memref<256x128xf32, #tpu.memory_space<vmem>>, vector<256x128xf32>
    %c0_2 = arith.constant 0 : index
    %c0_3 = arith.constant 0 : index
    %c0_4 = arith.constant 0 : index
    %4 = vector.load %arg3[%c0_2, %c0_3, %c0_4] : memref<1x256x128xbf16, #tpu.memory_space<vmem>>, vector<1x256x128xbf16>
    %5 = vector.shape_cast %4 : vector<1x256x128xbf16> to vector<256x128xbf16>
    %c0_5 = arith.constant 0 : index
    %c0_6 = arith.constant 0 : index
    %6 = vector.load %arg4[%c0_5, %c0_6] : memref<128x128xbf16, #tpu.memory_space<vmem>>, vector<128x128xbf16>
    %cst = arith.constant dense<0.000000e+00> : vector<256x128xf32>
    %7 = tpu.matmul %5, %6, %cst {dimension_numbers = #tpu.dot_dimension_numbers<[1], [0], [0], [1], [0, 0, 1, 1], [], []>} : vector<256x128xbf16>, vector<128x128xbf16>, vector<256x128xf32> -> vector<256x128xf32>
    %8 = arith.addf %3, %7 : vector<256x128xf32>
    %c0_7 = arith.constant 0 : index
    %c0_8 = arith.constant 0 : index
    %9 = vector.load %arg7[%c0_7, %c0_8] : memref<256x128xf32, #tpu.memory_space<vmem>>, vector<256x128xf32>
    tpu.vector_store %arg7[%c0_7, %c0_8], %8 {strides = array<i32>} : memref<256x128xf32, #tpu.memory_space<vmem>>, vector<256x128xf32>,
    %c0_i32_9 = arith.constant 0 : i32
    %10 = arith.cmpi eq, %arg2, %c0_i32_9 : i32
    %11 = arith.extui %10 : i1 to i32
    %c0_i32_10 = arith.constant 0 : i32
    %12 = arith.cmpi ne, %11, %c0_i32_10 : i32
    scf.if %12 {
      %c0_11 = arith.constant 0 : index
      %c0_12 = arith.constant 0 : index
      %13 = vector.load %arg7[%c0_11, %c0_12] : memref<256x128xf32, #tpu.memory_space<vmem>>, vector<256x128xf32>
      %c0_13 = arith.constant 0 : index
      %c0_14 = arith.constant 0 : index
      %14 = vector.load %arg5[%c0_13, %c0_14] : memref<1x128xf32, #tpu.memory_space<vmem>>, vector<1x128xf32>
      %15 = vector.broadcast %14 : vector<1x128xf32> to vector<256x128xf32>
      %16 = arith.addf %13, %15 : vector<256x128xf32>
      %cst_15 = arith.constant 0.000000e+00 : f32
      %17 = vector.broadcast %cst_15 : f32 to vector<256x128xf32>
      %18 = arith.maximumf %16, %17 : vector<256x128xf32>
      %19 = arith.truncf %18 : vector<256x128xf32> to vector<256x128xbf16>
      %c0_16 = arith.constant 0 : index
      %c0_17 = arith.constant 0 : index
      %c0_18 = arith.constant 0 : index
      %20 = vector.load %arg6[%c0_16, %c0_17, %c0_18] : memref<1x256x128xbf16, #tpu.memory_space<vmem>>, vector<1x256x128xbf16>
      %21 = vector.shape_cast %20 : vector<1x256x128xbf16> to vector<256x128xbf16>
      %22 = vector.shape_cast %19 : vector<256x128xbf16> to vector<1x256x128xbf16>
      tpu.vector_store %arg6[%c0_16, %c0_17, %c0_18], %22 {strides = array<i32>} : memref<1x256x128xbf16, #tpu.memory_space<vmem>>, vector<1x256x128xbf16>,
    } else {
    }
    return
  }
  func.func @transform_0(%arg0: i32, %arg1: i32, %arg2: i32) -> (i32, i32, i32) {
    %c0_i32 = arith.constant 0 : i32
    return %arg0, %arg1, %arg2 : i32, i32, i32
  }
  func.func @transform_1(%arg0: i32, %arg1: i32, %arg2: i32) -> (i32, i32) {
    %c0_i32 = arith.constant 0 : i32
    %c0_i32_0 = arith.constant 0 : i32
    %c0_i32_1 = arith.constant 0 : i32
    return %c0_i32, %c0_i32_0 : i32, i32
  }
  func.func @transform_2(%arg0: i32, %arg1: i32, %arg2: i32) -> (i32, i32) {
    %c0_i32 = arith.constant 0 : i32
    %c0_i32_0 = arith.constant 0 : i32
    %c0_i32_1 = arith.constant 0 : i32
    return %c0_i32, %c0_i32_0 : i32, i32
  }
  func.func @transform_3(%arg0: i32, %arg1: i32, %arg2: i32) -> (i32, i32, i32) {
    %c0_i32 = arith.constant 0 : i32
    %c0_i32_0 = arith.constant 0 : i32
    return %arg0, %arg1, %c0_i32 : i32, i32, i32
  }
}

</mosaic_0001>

<llo_original>
// kernel: tpu_custom_call.1
$region0: #{tpu_custom_call.1}
  #allocation0 [shape = 'u32[]', space=smem, size = 0x4, offset = 0x4, fixed_abs, tag = 'smem constant byte address 0x4 - core index']
  #allocation1 [shape = 'u32[144,128]{1,0:T(1,128)}', space=vmem, size = 0x12000, scoped, tag = 'internal scratch']
  #allocation2 [shape = 'f32[256,128]{1,0:T(8,128)}', space=vmem, size = 0x20000, scoped, tag = 'scratch operand']
  %s0 = inlined_call_operand.hbm [shape: bf16[2,256,128], index: 0, kind: input, shape index: {}]
  %s1 = inlined_call_operand.hbm [shape: bf16[128,128], index: 1, kind: input, shape index: {}]
  %s2 = inlined_call_operand.hbm [shape: f32[1,128], index: 2, kind: input, shape index: {}]
  %s3 = inlined_call_operand.hbm [shape: bf16[2,256,128], index: 3, kind: output, shape index: {}]
  %s4 = sld [smem:[#allocation0]]
  $region65: #{tpu_custom_call.1} parent=0
    _
  %s6 = ssub.s32 1, %s4
  %s7 = scalar_select 0, %s6, %s4
  $region1: #{tpu_custom_call.1} parent=0
    #allocation3 [shape = 'u8[131072]{0}', space=vmem, size = 0x20000, scoped, tag = 'input window, operand 0']
    #allocation4 [shape = 's32[2]{0}', space=sflag, size = 0x8, scoped, tag = 'scoped memory for tpu_custom_call.1']
    #allocation5 [shape = 's32[2]{0}', space=sflag, size = 0x8, scoped, tag = 'scoped memory for tpu_custom_call.1']
    #allocation6 [shape = 'u8[32768]{0}', space=vmem, size = 0x8000, scoped, tag = 'input window, operand 1, single buffered']
    #allocation7 [shape = 's32[1]{0}', space=sflag, size = 0x4, scoped, tag = 'scoped memory for tpu_custom_call.1']
    #allocation8 [shape = 'u8[512]{0}', space=vmem, size = 0x400, scoped, tag = 'input window, operand 2, single buffered']
    #allocation9 [shape = 'u8[131072]{0}', space=vmem, size = 0x20000, scoped, tag = 'output window, operand 0']
    %8 = vsyncpa [#allocation4], 0
    %s9 = scalar_lea.sflag [#allocation4], 1
    %10 = vsyncpa %s9, 0
    %11 = vsyncpa [#allocation7], 0
    %12 = vsyncpa [#allocation5], 0
    %s13 = scalar_lea.sflag [#allocation5], 1
    %14 = vsyncpa %s13, 0
    loop: start=0, step=1, limit=4
    $region2: #{tpu_custom_call.1} parent=1 // loop_pre_header
      _
    $region3: #{tpu_custom_call.1} parent=1 // loop_header
      %s16 = sphi 0, %s20
      %p17 = scmp.ge.s32.totalorder %s16, 4
      %s23 = sphi 0, %s42
      %s24 = sphi 0, %s38
      %s25 = sphi 0, %s34
      %s26 = sphi 0, %s23
      %s27 = sphi 0, %s24
      %s28 = sphi 0, %s25
      %s29 = sphi 0, %s26
      %s30 = sphi 0, %s27
      %s31 = sphi 0, %s28
      %s49 = sphi 0, %s51
      %s52 = sphi 0, %s49
      %s53 = sphi 0, %s52
      %s69 = sphi 0, %s53
      %s73 = sphi 0, %s73
      %s75 = sphi 0, %s73
      %s76 = sphi 0, %s75
      %s90 = sphi 0, %s76
      %s94 = sphi 0, %s94
      %s96 = sphi 0, %s94
      %s97 = sphi 0, %s96
      %s111 = sphi 0, %s97
      %s119 = sphi 0, %s121
      %s122 = sphi 0, %s119
      %s123 = sphi 0, %s122
      %s139 = sphi 0, %s123
    $region4: #{tpu_custom_call.1} parent=1 // loop_header_branch
      %19 = sbr.rel (%p17) target = $region8
    $region5: #{tpu_custom_call.1} parent=1 // loop_body
      %s21 = ssub.s32 %s16, 1
      %s22 = ssub.s32 %s16, 2
      %s32 = sadd.s32 1, %s25
      %p33 = scmp.ge.s32.totalorder %s32, 1
      %s34 = scalar_select %p33, 0, %s32
      %s35 = sadd.s32 1, %s24
      %s36 = scalar_select %p33, %s35, %s24
      %p37 = scmp.ge.s32.totalorder %s36, 1
      %s38 = scalar_select %p37, 0, %s36
      %s39 = sadd.s32 1, %s23
      %s40 = scalar_select %p37, %s39, %s23
      %p41 = scmp.ge.s32.totalorder %s40, 2
      %s42 = scalar_select %p41, 0, %s40
      %s43 = ssub.s32 %s23, %s42
      %s44 = ssub.s32 %s24, %s38
      %s45 = sor.u32 %s43, %s44
      %s46 = ssub.s32 %s25, %s34
      %s47 = sor.u32 %s45, %s46
      %p48 = scmp.eq.s32.totalorder %s47, 0
      %s50 = sadd.s32 %s49, 1
      %s51 = scalar_select %p48, %s49, %s50
      %p54 = pneg %p48
      %p55 = scmp.eq.s32.totalorder %s16, 1
      %p56 = por %p54, %p55
      %p57 = scmp.ne.s32.totalorder %s49, %s52
      %p58 = scmp.eq.s32.totalorder %s16, 0
      %p59 = por %p57, %p58
      %p60 = scmp.ne.s32.totalorder %s49, %s52
      %p61 = scmp.eq.s32.totalorder %s21, 1
      %p62 = por %p60, %p61
      %p63 = scmp.ne.s32.totalorder %s52, %s53
      %p64 = scmp.eq.s32.totalorder %s21, 0
      %p65 = por %p63, %p64
      %p66 = scmp.ne.s32.totalorder %s52, %s53
      %p67 = scmp.eq.s32.totalorder %s22, 1
      %p68 = por %p66, %p67
      %p70 = scmp.ne.s32.totalorder %s53, %s69
      %p71 = scmp.eq.s32.totalorder %s22, 0
      %p72 = por %p70, %p71
      %s74 = sadd.s32 %s73, 1
      %p77 = scmp.eq.s32.totalorder %s16, 1
      %p78 = scmp.ne.s32.totalorder %s73, %s75
      %p79 = scmp.eq.s32.totalorder %s16, 0
      %p80 = por %p78, %p79
      %p81 = scmp.ne.s32.totalorder %s73, %s75
      %p82 = scmp.eq.s32.totalorder %s21, 1
      %p83 = por %p81, %p82
      %p84 = scmp.ne.s32.totalorder %s75, %s76
      %p85 = scmp.eq.s32.totalorder %s21, 0
      %p86 = por %p84, %p85
      %p87 = scmp.ne.s32.totalorder %s75, %s76
      %p88 = scmp.eq.s32.totalorder %s22, 1
      %p89 = por %p87, %p88
      %p91 = scmp.ne.s32.totalorder %s76, %s90
      %p92 = scmp.eq.s32.totalorder %s22, 0
      %p93 = por %p91, %p92
      %s95 = sadd.s32 %s94, 1
      %p98 = scmp.eq.s32.totalorder %s16, 1
      %p99 = scmp.ne.s32.totalorder %s94, %s96
      %p100 = scmp.eq.s32.totalorder %s16, 0
      %p101 = por %p99, %p100
      %p102 = scmp.ne.s32.totalorder %s94, %s96
      %p103 = scmp.eq.s32.totalorder %s21, 1
      %p104 = por %p102, %p103
      %p105 = scmp.ne.s32.totalorder %s96, %s97
      %p106 = scmp.eq.s32.totalorder %s21, 0
      %p107 = por %p105, %p106
      %p108 = scmp.ne.s32.totalorder %s96, %s97
      %p109 = scmp.eq.s32.totalorder %s22, 1
      %p110 = por %p108, %p109
      %p112 = scmp.ne.s32.totalorder %s97, %s111
      %p113 = scmp.eq.s32.totalorder %s22, 0
      %p114 = por %p112, %p113
      %s115 = ssub.s32 %s23, %s42
      %s116 = ssub.s32 %s24, %s38
      %s117 = sor.u32 %s115, %s116
      %p118 = scmp.eq.s32.totalorder %s117, 0
      %s120 = sadd.s32 %s119, 1
      %s121 = scalar_select %p118, %s119, %s120
      %p124 = pneg %p118
      %p125 = scmp.eq.s32.totalorder %s16, 1
      %p126 = por %p124, %p125
      %p127 = scmp.ne.s32.totalorder %s119, %s122
      %p128 = scmp.eq.s32.totalorder %s16, 0
      %p129 = por %p127, %p128
      %p130 = scmp.ne.s32.totalorder %s119, %s122
      %p131 = scmp.eq.s32.totalorder %s21, 1
      %p132 = por %p130, %p131
      %p133 = scmp.ne.s32.totalorder %s122, %s123
      %p134 = scmp.eq.s32.totalorder %s21, 0
      %p135 = por %p133, %p134
      %p136 = scmp.ne.s32.totalorder %s122, %s123
      %p137 = scmp.eq.s32.totalorder %s22, 1
      %p138 = por %p136, %p137
      %p140 = scmp.ne.s32.totalorder %s123, %s139
      %p141 = scmp.eq.s32.totalorder %s22, 0
      %p142 = por %p140, %p141
      %p143 = scmp.le.s32.totalorder 1, %s16
      %p144 = scmp.lt.s32.totalorder %s16, 3
      %p145 = pnand %p143, %p144
      %p146 = pneg %p145
      // Predicated region
      $region9: #{tpu_custom_call.1} parent=5 // pred_check
        _
      $region10: #{tpu_custom_call.1} parent=5 // pred_check_branch
        %148 = sbr.rel (%p145) target = $region12
      $region11: #{tpu_custom_call.1} parent=5 // pred_region
        %s149 = ssub.s32 %s16, 1
        // Predicated region
        $region13: #{tpu_custom_call.1} parent=11 // pred_check
          %p150 = pneg %p86
        $region14: #{tpu_custom_call.1} parent=11 // pred_check_branch
          %152 = sbr.rel (%p150) target = $region16
        $region15: #{tpu_custom_call.1} parent=11 // pred_region
          %s154 = ssub.s32 1024, 1024
          %155 = vsyncadd [#allocation7], %s154
          %s156 = sshll.u32 [#allocation6], 4
          %s157 = int_to_ptr.vmem [resolvable:$true] %s156
          %162 = dma.hbm_to_vmem [thread:$0]  %s1, 1024, %s157, [#allocation7], 64, 64, 4
        $region16: #{tpu_custom_call.1} parent=11 // pred_fallthru
          _
        // Predicated region
        $region17: #{tpu_custom_call.1} parent=11 // pred_check
          %p163 = pneg %p107
        $region18: #{tpu_custom_call.1} parent=11 // pred_check_branch
          %165 = sbr.rel (%p163) target = $region20
        $region19: #{tpu_custom_call.1} parent=11 // pred_region
          %s167 = ssub.s32 16, 16
          %168 = vsyncadd [#allocation7], %s167
          %s170 = sshll.u32 [#allocation8], 4
          %s171 = int_to_ptr.vmem [resolvable:$true] %s170
          %173 = dma.hbm_to_vmem [thread:$0]  %s2, 16, %s171, [#allocation7]
        $region20: #{tpu_custom_call.1} parent=11 // pred_fallthru
          _
      $region12: #{tpu_custom_call.1} parent=5 // pred_fallthru
        _
      %p174 = scmp.lt.s32.totalorder %s16, 2
      // Predicated region
      $region21: #{tpu_custom_call.1} parent=5 // pred_check
        %p175 = pneg %p174
      $region22: #{tpu_custom_call.1} parent=5 // pred_check_branch
        %177 = sbr.rel (%p175) target = $region24
      $region23: #{tpu_custom_call.1} parent=5 // pred_region
        // Predicated region
        $region25: #{tpu_custom_call.1} parent=23 // pred_check
          %p178 = pneg %p59
        $region26: #{tpu_custom_call.1} parent=23 // pred_check_branch
          %180 = sbr.rel (%p178) target = $region28
        $region27: #{tpu_custom_call.1} parent=23 // pred_region
          %s181 = sand.u32 %s49, 1
          %s182 = scalar_lea.sflag [#allocation4], %s181
          %s183 = sand.u32 %s49, 1
          %s184 = smul.addr %s183, 128
          %s185 = scalar_lea.vmem [#allocation3], %s184
          %s186 = smul.u32 32, %s24
          %s188 = ssub.s32 2048, 2048
          %189 = vsyncadd %s182, %s188
          %s190 = sadd.s32 %s25, %s186
          %s191 = smul.addr %s23, 32
          %s192 = sadd.s32 %s190, %s191
          %s193 = smul.addr %s192, 64
          %s194 = scalar_lea.hbm %s0, %s193
          %s195 = sshll.u32 %s185, 4
          %s196 = int_to_ptr.vmem [resolvable:$true] %s195
          %201 = dma.hbm_to_vmem [thread:$0]  %s194, 2048, %s196, %s182, 64, 64, 4
        $region28: #{tpu_custom_call.1} parent=23 // pred_fallthru
          _
      $region24: #{tpu_custom_call.1} parent=5 // pred_fallthru
        _
      %p202 = scmp.le.s32.totalorder 1, %s16
      %p203 = scmp.lt.s32.totalorder %s16, 3
      %p204 = pnand %p202, %p203
      %p205 = pneg %p204
      // Predicated region
      $region29: #{tpu_custom_call.1} parent=5 // pred_check
        _
      $region30: #{tpu_custom_call.1} parent=5 // pred_check_branch
        %207 = sbr.rel (%p204) target = $region32
      $region31: #{tpu_custom_call.1} parent=5 // pred_region
        %s208 = ssub.s32 %s16, 1
        %s209 = sand.u32 %s52, 1
        %s210 = scalar_lea.sflag [#allocation4], %s209
        %s211 = sand.u32 %s52, 1
        %s212 = smul.addr %s211, 128
        %s213 = scalar_lea.vmem [#allocation3], %s212
        // Predicated region
        $region33: #{tpu_custom_call.1} parent=31 // pred_check
          %p214 = pneg %p65
        $region34: #{tpu_custom_call.1} parent=31 // pred_check_branch
          %216 = sbr.rel (%p214) target = $region36
        $region35: #{tpu_custom_call.1} parent=31 // pred_region
          %217 = dma.done %s210, 2048
        $region36: #{tpu_custom_call.1} parent=31 // pred_fallthru
          _
        // Predicated region
        $region37: #{tpu_custom_call.1} parent=31 // pred_check
          %p218 = pneg %p86
        $region38: #{tpu_custom_call.1} parent=31 // pred_check_branch
          %220 = sbr.rel (%p218) target = $region40
        $region39: #{tpu_custom_call.1} parent=31 // pred_region
          %221 = dma.done [#allocation7], 1024
        $region40: #{tpu_custom_call.1} parent=31 // pred_fallthru
          _
        // Predicated region
        $region41: #{tpu_custom_call.1} parent=31 // pred_check
          %p222 = pneg %p107
        $region42: #{tpu_custom_call.1} parent=31 // pred_check_branch
          %224 = sbr.rel (%p222) target = $region44
        $region43: #{tpu_custom_call.1} parent=31 // pred_region
          %225 = dma.done [#allocation7], 16
        $region44: #{tpu_custom_call.1} parent=31 // pred_fallthru
          _
        %s226 = sand.u32 %s52, 1
        %s227 = scalar_lea.sflag [#allocation4], %s226
        %s228 = sand.u32 %s52, 1
        %s229 = smul.addr %s228, 128
        %s230 = scalar_lea.vmem [#allocation3], %s229
        %p231 = pneg %p65
        %p232 = pneg %p62
        %p233 = pneg %p86
        %p234 = pneg %p83
        %p235 = pneg %p107
        %p236 = pneg %p104
        %p237 = pneg %p135
        %p238 = pneg %p132
        %s239 = sand.u32 %s122, 1
        %s240 = scalar_lea.sflag [#allocation5], %s239
        %s241 = sand.u32 %s122, 1
        %s242 = smul.addr %s241, 128
        %s243 = scalar_lea.vmem [#allocation9], %s242
        %s244 = smul.u32 32, %s27
        %s245 = smul.u32 32, %s27
        %p247 = scmp.eq.s32.totalorder %s28, 0
        // Predicated region
        $region45: #{tpu_custom_call.1} parent=31 // pred_check
          %p248 = pneg %p247
        $region46: #{tpu_custom_call.1} parent=31 // pred_check_branch
          %250 = sbr.rel (%p248) target = $region48
        $region47: #{tpu_custom_call.1} parent=31 // pred_region
          %251 = vst [vmem:[#allocation2] sm:$0xff] 0.0
          %252 = vst [vmem:[#allocation2 + $0x8] sm:$0xff] 0.0
          %253 = vst [vmem:[#allocation2 + $0x10] sm:$0xff] 0.0
          %254 = vst [vmem:[#allocation2 + $0x18] sm:$0xff] 0.0
          %255 = vst [vmem:[#allocation2 + $0x20] sm:$0xff] 0.0
          %256 = vst [vmem:[#allocation2 + $0x28] sm:$0xff] 0.0
          %257 = vst [vmem:[#allocation2 + $0x30] sm:$0xff] 0.0
          %258 = vst [vmem:[#allocation2 + $0x38] sm:$0xff] 0.0
          %259 = vst [vmem:[#allocation2 + $0x40] sm:$0xff] 0.0
          %260 = vst [vmem:[#allocation2 + $0x48] sm:$0xff] 0.0
          %261 = vst [vmem:[#allocation2 + $0x50] sm:$0xff] 0.0
          %262 = vst [vmem:[#allocation2 + $0x58] sm:$0xff] 0.0
          %263 = vst [vmem:[#allocation2 + $0x60] sm:$0xff] 0.0
          %264 = vst [vmem:[#allocation2 + $0x68] sm:$0xff] 0.0
          %265 = vst [vmem:[#allocation2 + $0x70] sm:$0xff] 0.0
          %266 = vst [vmem:[#allocation2 + $0x78] sm:$0xff] 0.0
          %267 = vst [vmem:[#allocation2 + $0x80] sm:$0xff] 0.0
          %268 = vst [vmem:[#allocation2 + $0x88] sm:$0xff] 0.0
          %269 = vst [vmem:[#allocation2 + $0x90] sm:$0xff] 0.0
          %270 = vst [vmem:[#allocation2 + $0x98] sm:$0xff] 0.0
          %271 = vst [vmem:[#allocation2 + $0xa0] sm:$0xff] 0.0
          %272 = vst [vmem:[#allocation2 + $0xa8] sm:$0xff] 0.0
          %273 = vst [vmem:[#allocation2 + $0xb0] sm:$0xff] 0.0
          %274 = vst [vmem:[#allocation2 + $0xb8] sm:$0xff] 0.0
          %275 = vst [vmem:[#allocation2 + $0xc0] sm:$0xff] 0.0
          %276 = vst [vmem:[#allocation2 + $0xc8] sm:$0xff] 0.0
          %277 = vst [vmem:[#allocation2 + $0xd0] sm:$0xff] 0.0
          %278 = vst [vmem:[#allocation2 + $0xd8] sm:$0xff] 0.0
          %279 = vst [vmem:[#allocation2 + $0xe0] sm:$0xff] 0.0
          %280 = vst [vmem:[#allocation2 + $0xe8] sm:$0xff] 0.0
          %281 = vst [vmem:[#allocation2 + $0xf0] sm:$0xff] 0.0
          %282 = vst [vmem:[#allocation2 + $0xf8] sm:$0xff] 0.0
        $region48: #{tpu_custom_call.1} parent=31 // pred_fallthru
          _
        %v283 = vld [vmem:[#allocation2] sm:$0xff]
        %v284 = vld [vmem:[#allocation2 + $0x8] sm:$0xff]
        %v285 = vld [vmem:[#allocation2 + $0x10] sm:$0xff]
        %v286 = vld [vmem:[#allocation2 + $0x18] sm:$0xff]
        %v287 = vld [vmem:[#allocation2 + $0x20] sm:$0xff]
        %v288 = vld [vmem:[#allocation2 + $0x28] sm:$0xff]
        %v289 = vld [vmem:[#allocation2 + $0x30] sm:$0xff]
        %v290 = vld [vmem:[#allocation2 + $0x38] sm:$0xff]
        %v291 = vld [vmem:[#allocation2 + $0x40] sm:$0xff]
        %v292 = vld [vmem:[#allocation2 + $0x48] sm:$0xff]
        %v293 = vld [vmem:[#allocation2 + $0x50] sm:$0xff]
        %v294 = vld [vmem:[#allocation2 + $0x58] sm:$0xff]
        %v295 = vld [vmem:[#allocation2 + $0x60] sm:$0xff]
        %v296 = vld [vmem:[#allocation2 + $0x68] sm:$0xff]
        %v297 = vld [vmem:[#allocation2 + $0x70] sm:$0xff]
        %v298 = vld [vmem:[#allocation2 + $0x78] sm:$0xff]
        %v299 = vld [vmem:[#allocation2 + $0x80] sm:$0xff]
        %v300 = vld [vmem:[#allocation2 + $0x88] sm:$0xff]
        %v301 = vld [vmem:[#allocation2 + $0x90] sm:$0xff]
        %v302 = vld [vmem:[#allocation2 + $0x98] sm:$0xff]
        %v303 = vld [vmem:[#allocation2 + $0xa0] sm:$0xff]
        %v304 = vld [vmem:[#allocation2 + $0xa8] sm:$0xff]
        %v305 = vld [vmem:[#allocation2 + $0xb0] sm:$0xff]
        %v306 = vld [vmem:[#allocation2 + $0xb8] sm:$0xff]
        %v307 = vld [vmem:[#allocation2 + $0xc0] sm:$0xff]
        %v308 = vld [vmem:[#allocation2 + $0xc8] sm:$0xff]
        %v309 = vld [vmem:[#allocation2 + $0xd0] sm:$0xff]
        %v310 = vld [vmem:[#allocation2 + $0xd8] sm:$0xff]
        %v311 = vld [vmem:[#allocation2 + $0xe0] sm:$0xff]
        %v312 = vld [vmem:[#allocation2 + $0xe8] sm:$0xff]
        %v313 = vld [vmem:[#allocation2 + $0xf0] sm:$0xff]
        %v314 = vld [vmem:[#allocation2 + $0xf8] sm:$0xff]
        %v315 = vld [vmem:[%s213] sm:$0xf]
        %v316 = vld [vmem:[%s213 + $0x4] sm:$0xf]
        %v317 = vld [vmem:[%s213 + $0x8] sm:$0xf]
        %v318 = vld [vmem:[%s213 + $0xc] sm:$0xf]
        %v319 = vld [vmem:[%s213 + $0x10] sm:$0xf]
        %v320 = vld [vmem:[%s213 + $0x14] sm:$0xf]
        %v321 = vld [vmem:[%s213 + $0x18] sm:$0xf]
        %v322 = vld [vmem:[%s213 + $0x1c] sm:$0xf]
        %v323 = vld [vmem:[%s213 + $0x20] sm:$0xf]
        %v324 = vld [vmem:[%s213 + $0x24] sm:$0xf]
        %v325 = vld [vmem:[%s213 + $0x28] sm:$0xf]
        %v326 = vld [vmem:[%s213 + $0x2c] sm:$0xf]
        %v327 = vld [vmem:[%s213 + $0x30] sm:$0xf]
        %v328 = vld [vmem:[%s213 + $0x34] sm:$0xf]
        %v329 = vld [vmem:[%s213 + $0x38] sm:$0xf]
        %v330 = vld [vmem:[%s213 + $0x3c] sm:$0xf]
        %v331 = vld [vmem:[%s213 + $0x40] sm:$0xf]
        %v332 = vld [vmem:[%s213 + $0x44] sm:$0xf]
        %v333 = vld [vmem:[%s213 + $0x48] sm:$0xf]
        %v334 = vld [vmem:[%s213 + $0x4c] sm:$0xf]
        %v335 = vld [vmem:[%s213 + $0x50] sm:$0xf]
        %v336 = vld [vmem:[%s213 + $0x54] sm:$0xf]
        %v337 = vld [vmem:[%s213 + $0x58] sm:$0xf]
        %v338 = vld [vmem:[%s213 + $0x5c] sm:$0xf]
        %v339 = vld [vmem:[%s213 + $0x60] sm:$0xf]
        %v340 = vld [vmem:[%s213 + $0x64] sm:$0xf]
        %v341 = vld [vmem:[%s213 + $0x68] sm:$0xf]
        %v342 = vld [vmem:[%s213 + $0x6c] sm:$0xf]
        %v343 = vld [vmem:[%s213 + $0x70] sm:$0xf]
        %v344 = vld [vmem:[%s213 + $0x74] sm:$0xf]
        %v345 = vld [vmem:[%s213 + $0x78] sm:$0xf]
        %v346 = vld [vmem:[%s213 + $0x7c] sm:$0xf]
        %v347 = vld [vmem:[#allocation6] sm:$0xf]
        %v348 = vld [vmem:[#allocation6 + $0x4] sm:$0xf]
        %v349 = vld [vmem:[#allocation6 + $0x8] sm:$0xf]
        %v350 = vld [vmem:[#allocation6 + $0xc] sm:$0xf]
        %v351 = vld [vmem:[#allocation6 + $0x10] sm:$0xf]
        %v352 = vld [vmem:[#allocation6 + $0x14] sm:$0xf]
        %v353 = vld [vmem:[#allocation6 + $0x18] sm:$0xf]
        %v354 = vld [vmem:[#allocation6 + $0x1c] sm:$0xf]
        %v355 = vld [vmem:[#allocation6 + $0x20] sm:$0xf]
        %v356 = vld [vmem:[#allocation6 + $0x24] sm:$0xf]
        %v357 = vld [vmem:[#allocation6 + $0x28] sm:$0xf]
        %v358 = vld [vmem:[#allocation6 + $0x2c] sm:$0xf]
        %v359 = vld [vmem:[#allocation6 + $0x30] sm:$0xf]
        %v360 = vld [vmem:[#allocation6 + $0x34] sm:$0xf]
        %v361 = vld [vmem:[#allocation6 + $0x38] sm:$0xf]
        %v362 = vld [vmem:[#allocation6 + $0x3c] sm:$0xf]
        %v395 = vunpack.c.l.b16 %v315
        %v396 = vunpack.c.l.b16 %v316
        %v397 = vunpack.c.l.b16 %v317
        %v398 = vunpack.c.l.b16 %v318
        %v399 = vunpack.c.l.b16 %v319
        %v400 = vunpack.c.l.b16 %v320
        %v401 = vunpack.c.l.b16 %v321
        %v402 = vunpack.c.l.b16 %v322
        %v403 = vunpack.c.l.b16 %v323
        %v404 = vunpack.c.l.b16 %v324
        %v405 = vunpack.c.l.b16 %v325
        %v406 = vunpack.c.l.b16 %v326
        %v407 = vunpack.c.l.b16 %v327
        %v408 = vunpack.c.l.b16 %v328
        %v409 = vunpack.c.l.b16 %v329
        %v410 = vunpack.c.l.b16 %v330
        %v411 = vunpack.c.l.b16 %v331
        %v412 = vunpack.c.l.b16 %v332
        %v413 = vunpack.c.l.b16 %v333
        %v414 = vunpack.c.l.b16 %v334
        %v415 = vunpack.c.l.b16 %v335
        %v416 = vunpack.c.l.b16 %v336
        %v417 = vunpack.c.l.b16 %v337
        %v418 = vunpack.c.l.b16 %v338
        %v419 = vunpack.c.l.b16 %v339
        %v420 = vunpack.c.l.b16 %v340
        %v421 = vunpack.c.l.b16 %v341
        %v422 = vunpack.c.l.b16 %v342
        %v423 = vunpack.c.l.b16 %v343
        %v424 = vunpack.c.l.b16 %v344
        %v425 = vunpack.c.l.b16 %v345
        %v426 = vunpack.c.l.b16 %v346
        %v427 = vpack.c.b16 %v396, %v395
        %v428 = vpack.c.b16 %v398, %v397
        %v429 = vpack.c.b16 %v400, %v399
        %v430 = vpack.c.b16 %v402, %v401
        %v431 = vpack.c.b16 %v404, %v403
        %v432 = vpack.c.b16 %v406, %v405
        %v433 = vpack.c.b16 %v408, %v407
        %v434 = vpack.c.b16 %v410, %v409
        %v435 = vpack.c.b16 %v412, %v411
        %v436 = vpack.c.b16 %v414, %v413
        %v437 = vpack.c.b16 %v416, %v415
        %v438 = vpack.c.b16 %v418, %v417
        %v439 = vpack.c.b16 %v420, %v419
        %v440 = vpack.c.b16 %v422, %v421
        %v441 = vpack.c.b16 %v424, %v423
        %v442 = vpack.c.b16 %v426, %v425
        %v475 = vunpack.c.l.b16 %v347
        %v476 = vunpack.c.l.b16 %v348
        %v477 = vunpack.c.l.b16 %v349
        %v478 = vunpack.c.l.b16 %v350
        %v479 = vunpack.c.l.b16 %v351
        %v480 = vunpack.c.l.b16 %v352
        %v481 = vunpack.c.l.b16 %v353
        %v482 = vunpack.c.l.b16 %v354
        %v483 = vunpack.c.l.b16 %v355
        %v484 = vunpack.c.l.b16 %v356
        %v485 = vunpack.c.l.b16 %v357
        %v486 = vunpack.c.l.b16 %v358
        %v487 = vunpack.c.l.b16 %v359
        %v488 = vunpack.c.l.b16 %v360
        %v489 = vunpack.c.l.b16 %v361
        %v490 = vunpack.c.l.b16 %v362
        %v491 = vpack.c.b16 %v476, %v475
        %v492 = vpack.c.b16 %v478, %v477
        %v493 = vpack.c.b16 %v480, %v479
        %v494 = vpack.c.b16 %v482, %v481
        %v495 = vpack.c.b16 %v484, %v483
        %v496 = vpack.c.b16 %v486, %v485
        %v497 = vpack.c.b16 %v488, %v487
        %v498 = vpack.c.b16 %v490, %v489
        %507 = vmatprep.subr.bf16.mxu0 0
        %508 = vmatpush1.bf16.msra.mxu0 %v491
        %509 = vmatprep.subr.bf16.mxu0 0
        %510 = vmatpush1.bf16.msra.mxu0 %v492
        %511 = vmatprep.subr.bf16.mxu0 0
        %512 = vmatpush1.bf16.msra.mxu0 %v493
        %513 = vmatprep.subr.bf16.mxu0 0
        %514 = vmatpush1.bf16.msra.mxu0 %v494
        %515 = vmatprep.subr.bf16.mxu0 0
        %516 = vmatpush1.bf16.msra.mxu0 %v495
        %517 = vmatprep.subr.bf16.mxu0 0
        %518 = vmatpush1.bf16.msra.mxu0 %v496
        %519 = vmatprep.subr.bf16.mxu0 0
        %520 = vmatpush1.bf16.msra.mxu0 %v497
        %521 = vmatprep.subr.bf16.mxu0 0
        %522 = vmatpush1.bf16.msra.mxu0 %v498
        %523 = vmatprep.subr.bf16.mxu0 0
        %524 = vmatpush1.bf16.msra.mxu0 0
        %525 = vmatprep.subr.bf16.mxu0 0
        %526 = vmatpush1.bf16.msra.mxu0 0
        %527 = vmatprep.subr.bf16.mxu0 0
        %528 = vmatpush1.bf16.msra.mxu0 0
        %529 = vmatprep.subr.bf16.mxu0 0
        %530 = vmatpush1.bf16.msra.mxu0 0
        %531 = vmatprep.subr.bf16.mxu0 0
        %532 = vmatpush1.bf16.msra.mxu0 0
        %533 = vmatprep.subr.bf16.mxu0 0
        %534 = vmatpush1.bf16.msra.mxu0 0
        %535 = vmatprep.subr.bf16.mxu0 0
        %536 = vmatpush1.bf16.msra.mxu0 0
        %537 = vmatprep.subr.bf16.mxu0 0
        %538 = vmatpush1.bf16.msra.mxu0 0
        %539 = vmatprep.mubr.bf16.mxu0 0
        %540 = vmatmul.mubr.bf16.gmra.mrb[0].mxu0 %v427
        %v541 = vpop.f32.mrb[0].mxu0
        %v542 = vadd.f32 0.0, %v541
        %v543 = vpop.f32.mrb[0].mxu0
        %v544 = vpop.f32.mrb[0].mxu0
        %v545 = vadd.f32 0.0, %v544
        %v546 = vpop.f32.mrb[0].mxu0
        %547 = vmatprep.mubr.bf16.mxu0 0
        %548 = vmatmul.mubr.bf16.gmra.mrb[0].mxu0 %v428
        %v549 = vpop.f32.mrb[0].mxu0
        %v550 = vadd.f32 0.0, %v549
        %v551 = vpop.f32.mrb[0].mxu0
        %v552 = vpop.f32.mrb[0].mxu0
        %v553 = vadd.f32 0.0, %v552
        %v554 = vpop.f32.mrb[0].mxu0
        %555 = vmatprep.mubr.bf16.mxu0 0
        %556 = vmatmul.mubr.bf16.gmra.mrb[0].mxu0 %v429
        %v557 = vpop.f32.mrb[0].mxu0
        %v558 = vadd.f32 0.0, %v557
        %v559 = vpop.f32.mrb[0].mxu0
        %v560 = vpop.f32.mrb[0].mxu0
        %v561 = vadd.f32 0.0, %v560
        %v562 = vpop.f32.mrb[0].mxu0
        %563 = vmatprep.mubr.bf16.mxu0 0
        %564 = vmatmul.mubr.bf16.gmra.mrb[0].mxu0 %v430
        %v565 = vpop.f32.mrb[0].mxu0
        %v566 = vadd.f32 0.0, %v565
        %v567 = vpop.f32.mrb[0].mxu0
        %v568 = vpop.f32.mrb[0].mxu0
        %v569 = vadd.f32 0.0, %v568
        %v570 = vpop.f32.mrb[0].mxu0
        %571 = vmatprep.mubr.bf16.mxu0 0
        %572 = vmatmul.mubr.bf16.gmra.mrb[0].mxu0 %v431
        %v573 = vpop.f32.mrb[0].mxu0
        %v574 = vadd.f32 0.0, %v573
        %v575 = vpop.f32.mrb[0].mxu0
        %v576 = vpop.f32.mrb[0].mxu0
        %v577 = vadd.f32 0.0, %v576
        %v578 = vpop.f32.mrb[0].mxu0
        %579 = vmatprep.mubr.bf16.mxu0 0
        %580 = vmatmul.mubr.bf16.gmra.mrb[0].mxu0 %v432
        %v581 = vpop.f32.mrb[0].mxu0
        %v582 = vadd.f32 0.0, %v581
        %v583 = vpop.f32.mrb[0].mxu0
        %v584 = vpop.f32.mrb[0].mxu0
        %v585 = vadd.f32 0.0, %v584
        %v586 = vpop.f32.mrb[0].mxu0
        %587 = vmatprep.mubr.bf16.mxu0 0
        %588 = vmatmul.mubr.bf16.gmra.mrb[0].mxu0 %v433
        %v589 = vpop.f32.mrb[0].mxu0
        %v590 = vadd.f32 0.0, %v589
        %v591 = vpop.f32.mrb[0].mxu0
        %v592 = vpop.f32.mrb[0].mxu0
        %v593 = vadd.f32 0.0, %v592
        %v594 = vpop.f32.mrb[0].mxu0
        %595 = vmatprep.mubr.bf16.mxu0 0
        %596 = vmatmul.mubr.bf16.gmra.mrb[0].mxu0 %v434
        %v597 = vpop.f32.mrb[0].mxu0
        %v598 = vadd.f32 0.0, %v597
        %v599 = vpop.f32.mrb[0].mxu0
        %v600 = vpop.f32.mrb[0].mxu0
        %v601 = vadd.f32 0.0, %v600
        %v602 = vpop.f32.mrb[0].mxu0
        %603 = vmatprep.mubr.bf16.mxu0 0
        %604 = vmatmul.mubr.bf16.gmra.mrb[0].mxu0 %v435
        %v605 = vpop.f32.mrb[0].mxu0
        %v606 = vadd.f32 0.0, %v605
        %v607 = vpop.f32.mrb[0].mxu0
        %v608 = vpop.f32.mrb[0].mxu0
        %v609 = vadd.f32 0.0, %v608
        %v610 = vpop.f32.mrb[0].mxu0
        %611 = vmatprep.mubr.bf16.mxu0 0
        %612 = vmatmul.mubr.bf16.gmra.mrb[0].mxu0 %v436
        %v613 = vpop.f32.mrb[0].mxu0
        %v614 = vadd.f32 0.0, %v613
        %v615 = vpop.f32.mrb[0].mxu0
        %v616 = vpop.f32.mrb[0].mxu0
        %v617 = vadd.f32 0.0, %v616
        %v618 = vpop.f32.mrb[0].mxu0
        %619 = vmatprep.mubr.bf16.mxu0 0
        %620 = vmatmul.mubr.bf16.gmra.mrb[0].mxu0 %v437
        %v621 = vpop.f32.mrb[0].mxu0
        %v622 = vadd.f32 0.0, %v621
        %v623 = vpop.f32.mrb[0].mxu0
        %v624 = vpop.f32.mrb[0].mxu0
        %v625 = vadd.f32 0.0, %v624
        %v626 = vpop.f32.mrb[0].mxu0
        %627 = vmatprep.mubr.bf16.mxu0 0
        %628 = vmatmul.mubr.bf16.gmra.mrb[0].mxu0 %v438
        %v629 = vpop.f32.mrb[0].mxu0
        %v630 = vadd.f32 0.0, %v629
        %v631 = vpop.f32.mrb[0].mxu0
        %v632 = vpop.f32.mrb[0].mxu0
        %v633 = vadd.f32 0.0, %v632
        %v634 = vpop.f32.mrb[0].mxu0
        %635 = vmatprep.mubr.bf16.mxu0 0
        %636 = vmatmul.mubr.bf16.gmra.mrb[0].mxu0 %v439
        %v637 = vpop.f32.mrb[0].mxu0
        %v638 = vadd.f32 0.0, %v637
        %v639 = vpop.f32.mrb[0].mxu0
        %v640 = vpop.f32.mrb[0].mxu0
        %v641 = vadd.f32 0.0, %v640
        %v642 = vpop.f32.mrb[0].mxu0
        %643 = vmatprep.mubr.bf16.mxu0 0
        %644 = vmatmul.mubr.bf16.gmra.mrb[0].mxu0 %v440
        %v645 = vpop.f32.mrb[0].mxu0
        %v646 = vadd.f32 0.0, %v645
        %v647 = vpop.f32.mrb[0].mxu0
        %v648 = vpop.f32.mrb[0].mxu0
        %v649 = vadd.f32 0.0, %v648
        %v650 = vpop.f32.mrb[0].mxu0
        %651 = vmatprep.mubr.bf16.mxu0 0
        %652 = vmatmul.mubr.bf16.gmra.mrb[0].mxu0 %v441
        %v653 = vpop.f32.mrb[0].mxu0
        %v654 = vadd.f32 0.0, %v653
        %v655 = vpop.f32.mrb[0].mxu0
        %v656 = vpop.f32.mrb[0].mxu0
        %v657 = vadd.f32 0.0, %v656
        %v658 = vpop.f32.mrb[0].mxu0
        %659 = vmatprep.mubr.bf16.mxu0 0
        %660 = vmatmul.mubr.bf16.gmra.mrb[0].mxu0 %v442
        %v661 = vpop.f32.mrb[0].mxu0
        %v662 = vadd.f32 0.0, %v661
        %v663 = vpop.f32.mrb[0].mxu0
        %v664 = vpop.f32.mrb[0].mxu0
        %v665 = vadd.f32 0.0, %v664
        %v666 = vpop.f32.mrb[0].mxu0
        %667 = vdwg.mxu0
        %v668 = vadd.f32 %v283, %v542
        %v669 = vadd.f32 %v284, %v545
        %v670 = vadd.f32 %v285, %v550
        %v671 = vadd.f32 %v286, %v553
        %v672 = vadd.f32 %v287, %v558
        %v673 = vadd.f32 %v288, %v561
        %v674 = vadd.f32 %v289, %v566
        %v675 = vadd.f32 %v290, %v569
        %v676 = vadd.f32 %v291, %v574
        %v677 = vadd.f32 %v292, %v577
        %v678 = vadd.f32 %v293, %v582
        %v679 = vadd.f32 %v294, %v585
        %v680 = vadd.f32 %v295, %v590
        %v681 = vadd.f32 %v296, %v593
        %v682 = vadd.f32 %v297, %v598
        %v683 = vadd.f32 %v298, %v601
        %v684 = vadd.f32 %v299, %v606
        %v685 = vadd.f32 %v300, %v609
        %v686 = vadd.f32 %v301, %v614
        %v687 = vadd.f32 %v302, %v617
        %v688 = vadd.f32 %v303, %v622
        %v689 = vadd.f32 %v304, %v625
        %v690 = vadd.f32 %v305, %v630
        %v691 = vadd.f32 %v306, %v633
        %v692 = vadd.f32 %v307, %v638
        %v693 = vadd.f32 %v308, %v641
        %v694 = vadd.f32 %v309, %v646
        %v695 = vadd.f32 %v310, %v649
        %v696 = vadd.f32 %v311, %v654
        %v697 = vadd.f32 %v312, %v657
        %v698 = vadd.f32 %v313, %v662
        %v699 = vadd.f32 %v314, %v665
        %700 = vst [vmem:[#allocation2] sm:$0xff] %v668
        %701 = vst [vmem:[#allocation2 + $0x8] sm:$0xff] %v669
        %702 = vst [vmem:[#allocation2 + $0x10] sm:$0xff] %v670
        %703 = vst [vmem:[#allocation2 + $0x18] sm:$0xff] %v671
        %704 = vst [vmem:[#allocation2 + $0x20] sm:$0xff] %v672
        %705 = vst [vmem:[#allocation2 + $0x28] sm:$0xff] %v673
        %706 = vst [vmem:[#allocation2 + $0x30] sm:$0xff] %v674
        %707 = vst [vmem:[#allocation2 + $0x38] sm:$0xff] %v675
        %708 = vst [vmem:[#allocation2 + $0x40] sm:$0xff] %v676
        %709 = vst [vmem:[#allocation2 + $0x48] sm:$0xff] %v677
        %710 = vst [vmem:[#allocation2 + $0x50] sm:$0xff] %v678
        %711 = vst [vmem:[#allocation2 + $0x58] sm:$0xff] %v679
        %712 = vst [vmem:[#allocation2 + $0x60] sm:$0xff] %v680
        %713 = vst [vmem:[#allocation2 + $0x68] sm:$0xff] %v681
        %714 = vst [vmem:[#allocation2 + $0x70] sm:$0xff] %v682
        %715 = vst [vmem:[#allocation2 + $0x78] sm:$0xff] %v683
        %716 = vst [vmem:[#allocation2 + $0x80] sm:$0xff] %v684
        %717 = vst [vmem:[#allocation2 + $0x88] sm:$0xff] %v685
        %718 = vst [vmem:[#allocation2 + $0x90] sm:$0xff] %v686
        %719 = vst [vmem:[#allocation2 + $0x98] sm:$0xff] %v687
        %720 = vst [vmem:[#allocation2 + $0xa0] sm:$0xff] %v688
        %721 = vst [vmem:[#allocation2 + $0xa8] sm:$0xff] %v689
        %722 = vst [vmem:[#allocation2 + $0xb0] sm:$0xff] %v690
        %723 = vst [vmem:[#allocation2 + $0xb8] sm:$0xff] %v691
        %724 = vst [vmem:[#allocation2 + $0xc0] sm:$0xff] %v692
        %725 = vst [vmem:[#allocation2 + $0xc8] sm:$0xff] %v693
        %726 = vst [vmem:[#allocation2 + $0xd0] sm:$0xff] %v694
        %727 = vst [vmem:[#allocation2 + $0xd8] sm:$0xff] %v695
        %728 = vst [vmem:[#allocation2 + $0xe0] sm:$0xff] %v696
        %729 = vst [vmem:[#allocation2 + $0xe8] sm:$0xff] %v697
        %730 = vst [vmem:[#allocation2 + $0xf0] sm:$0xff] %v698
        %731 = vst [vmem:[#allocation2 + $0xf8] sm:$0xff] %v699
        // Predicated region
        $region49: #{tpu_custom_call.1} parent=31 // pred_check
          %p732 = pneg %p247
        $region50: #{tpu_custom_call.1} parent=31 // pred_check_branch
          %734 = sbr.rel (%p732) target = $region52
        $region51: #{tpu_custom_call.1} parent=31 // pred_region
          %v735 = vld [vmem:[#allocation2] sm:$0xff]
          %v736 = vld [vmem:[#allocation2 + $0x8] sm:$0xff]
          %v737 = vld [vmem:[#allocation2 + $0x10] sm:$0xff]
          %v738 = vld [vmem:[#allocation2 + $0x18] sm:$0xff]
          %v739 = vld [vmem:[#allocation2 + $0x20] sm:$0xff]
          %v740 = vld [vmem:[#allocation2 + $0x28] sm:$0xff]
          %v741 = vld [vmem:[#allocation2 + $0x30] sm:$0xff]
          %v742 = vld [vmem:[#allocation2 + $0x38] sm:$0xff]
          %v743 = vld [vmem:[#allocation2 + $0x40] sm:$0xff]
          %v744 = vld [vmem:[#allocation2 + $0x48] sm:$0xff]
          %v745 = vld [vmem:[#allocation2 + $0x50] sm:$0xff]
          %v746 = vld [vmem:[#allocation2 + $0x58] sm:$0xff]
          %v747 = vld [vmem:[#allocation2 + $0x60] sm:$0xff]
          %v748 = vld [vmem:[#allocation2 + $0x68] sm:$0xff]
          %v749 = vld [vmem:[#allocation2 + $0x70] sm:$0xff]
          %v750 = vld [vmem:[#allocation2 + $0x78] sm:$0xff]
          %v751 = vld [vmem:[#allocation2 + $0x80] sm:$0xff]
          %v752 = vld [vmem:[#allocation2 + $0x88] sm:$0xff]
          %v753 = vld [vmem:[#allocation2 + $0x90] sm:$0xff]
          %v754 = vld [vmem:[#allocation2 + $0x98] sm:$0xff]
          %v755 = vld [vmem:[#allocation2 + $0xa0] sm:$0xff]
          %v756 = vld [vmem:[#allocation2 + $0xa8] sm:$0xff]
          %v757 = vld [vmem:[#allocation2 + $0xb0] sm:$0xff]
          %v758 = vld [vmem:[#allocation2 + $0xb8] sm:$0xff]
          %v759 = vld [vmem:[#allocation2 + $0xc0] sm:$0xff]
          %v760 = vld [vmem:[#allocation2 + $0xc8] sm:$0xff]
          %v761 = vld [vmem:[#allocation2 + $0xd0] sm:$0xff]
          %v762 = vld [vmem:[#allocation2 + $0xd8] sm:$0xff]
          %v763 = vld [vmem:[#allocation2 + $0xe0] sm:$0xff]
          %v764 = vld [vmem:[#allocation2 + $0xe8] sm:$0xff]
          %v765 = vld [vmem:[#allocation2 + $0xf0] sm:$0xff]
          %v766 = vld [vmem:[#allocation2 + $0xf8] sm:$0xff]
          %v767 = vld [vmem:[#allocation8] sm:$0x1]
          %v769 = vlaneseq
          %v770 = vshrl.u32 %v769, 7
          %v771 = vsub.s32 0, %v770
          %v772 = vrot.slane %v767, %v771
          %v774 = vadd.f32 %v735, %v772
          %v775 = vadd.f32 %v736, %v772
          %v776 = vadd.f32 %v737, %v772
          %v777 = vadd.f32 %v738, %v772
          %v778 = vadd.f32 %v739, %v772
          %v779 = vadd.f32 %v740, %v772
          %v780 = vadd.f32 %v741, %v772
          %v781 = vadd.f32 %v742, %v772
          %v782 = vadd.f32 %v743, %v772
          %v783 = vadd.f32 %v744, %v772
          %v784 = vadd.f32 %v745, %v772
          %v785 = vadd.f32 %v746, %v772
          %v786 = vadd.f32 %v747, %v772
          %v787 = vadd.f32 %v748, %v772
          %v788 = vadd.f32 %v749, %v772
          %v789 = vadd.f32 %v750, %v772
          %v790 = vadd.f32 %v751, %v772
          %v791 = vadd.f32 %v752, %v772
          %v792 = vadd.f32 %v753, %v772
          %v793 = vadd.f32 %v754, %v772
          %v794 = vadd.f32 %v755, %v772
          %v795 = vadd.f32 %v756, %v772
          %v796 = vadd.f32 %v757, %v772
          %v797 = vadd.f32 %v758, %v772
          %v798 = vadd.f32 %v759, %v772
          %v799 = vadd.f32 %v760, %v772
          %v800 = vadd.f32 %v761, %v772
          %v801 = vadd.f32 %v762, %v772
          %v802 = vadd.f32 %v763, %v772
          %v803 = vadd.f32 %v764, %v772
          %v804 = vadd.f32 %v765, %v772
          %v805 = vadd.f32 %v766, %v772
          %v806 = vmax.f32 %v774, 0.0
          %v807 = vmax.f32 %v775, 0.0
          %v808 = vmax.f32 %v776, 0.0
          %v809 = vmax.f32 %v777, 0.0
          %v810 = vmax.f32 %v778, 0.0
          %v811 = vmax.f32 %v779, 0.0
          %v812 = vmax.f32 %v780, 0.0
          %v813 = vmax.f32 %v781, 0.0
          %v814 = vmax.f32 %v782, 0.0
          %v815 = vmax.f32 %v783, 0.0
          %v816 = vmax.f32 %v784, 0.0
          %v817 = vmax.f32 %v785, 0.0
          %v818 = vmax.f32 %v786, 0.0
          %v819 = vmax.f32 %v787, 0.0
          %v820 = vmax.f32 %v788, 0.0
          %v821 = vmax.f32 %v789, 0.0
          %v822 = vmax.f32 %v790, 0.0
          %v823 = vmax.f32 %v791, 0.0
          %v824 = vmax.f32 %v792, 0.0
          %v825 = vmax.f32 %v793, 0.0
          %v826 = vmax.f32 %v794, 0.0
          %v827 = vmax.f32 %v795, 0.0
          %v828 = vmax.f32 %v796, 0.0
          %v829 = vmax.f32 %v797, 0.0
          %v830 = vmax.f32 %v798, 0.0
          %v831 = vmax.f32 %v799, 0.0
          %v832 = vmax.f32 %v800, 0.0
          %v833 = vmax.f32 %v801, 0.0
          %v834 = vmax.f32 %v802, 0.0
          %v835 = vmax.f32 %v803, 0.0
          %v836 = vmax.f32 %v804, 0.0
          %v837 = vmax.f32 %v805, 0.0
          %v838 = vpack.c.bf16 %v807, %v806
          %v839 = vpack.c.bf16 %v809, %v808
          %v840 = vpack.c.bf16 %v811, %v810
          %v841 = vpack.c.bf16 %v813, %v812
          %v842 = vpack.c.bf16 %v815, %v814
          %v843 = vpack.c.bf16 %v817, %v816
          %v844 = vpack.c.bf16 %v819, %v818
          %v845 = vpack.c.bf16 %v821, %v820
          %v846 = vpack.c.bf16 %v823, %v822
          %v847 = vpack.c.bf16 %v825, %v824
          %v848 = vpack.c.bf16 %v827, %v826
          %v849 = vpack.c.bf16 %v829, %v828
          %v850 = vpack.c.bf16 %v831, %v830
          %v851 = vpack.c.bf16 %v833, %v832
          %v852 = vpack.c.bf16 %v835, %v834
          %v853 = vpack.c.bf16 %v837, %v836
          %v870 = vunpack.c.l.b16 %v838
          %v871 = vunpack.c.h.b16 %v838
          %v872 = vunpack.c.l.b16 %v839
          %v873 = vunpack.c.h.b16 %v839
          %v874 = vunpack.c.l.b16 %v840
          %v875 = vunpack.c.h.b16 %v840
          %v876 = vunpack.c.l.b16 %v841
          %v877 = vunpack.c.h.b16 %v841
          %v878 = vunpack.c.l.b16 %v842
          %v879 = vunpack.c.h.b16 %v842
          %v880 = vunpack.c.l.b16 %v843
          %v881 = vunpack.c.h.b16 %v843
          %v882 = vunpack.c.l.b16 %v844
          %v883 = vunpack.c.h.b16 %v844
          %v884 = vunpack.c.l.b16 %v845
          %v885 = vunpack.c.h.b16 %v845
          %v886 = vunpack.c.l.b16 %v846
          %v887 = vunpack.c.h.b16 %v846
          %v888 = vunpack.c.l.b16 %v847
          %v889 = vunpack.c.h.b16 %v847
          %v890 = vunpack.c.l.b16 %v848
          %v891 = vunpack.c.h.b16 %v848
          %v892 = vunpack.c.l.b16 %v849
          %v893 = vunpack.c.h.b16 %v849
          %v894 = vunpack.c.l.b16 %v850
          %v895 = vunpack.c.h.b16 %v850
          %v896 = vunpack.c.l.b16 %v851
          %v897 = vunpack.c.h.b16 %v851
          %v898 = vunpack.c.l.b16 %v852
          %v899 = vunpack.c.h.b16 %v852
          %v900 = vunpack.c.l.b16 %v853
          %v901 = vunpack.c.h.b16 %v853
          %v902 = vpack.c.b16 %v870, %v870
          %v903 = vpack.c.b16 %v871, %v871
          %v904 = vpack.c.b16 %v872, %v872
          %v905 = vpack.c.b16 %v873, %v873
          %v906 = vpack.c.b16 %v874, %v874
          %v907 = vpack.c.b16 %v875, %v875
          %v908 = vpack.c.b16 %v876, %v876
          %v909 = vpack.c.b16 %v877, %v877
          %v910 = vpack.c.b16 %v878, %v878
          %v911 = vpack.c.b16 %v879, %v879
          %v912 = vpack.c.b16 %v880, %v880
          %v913 = vpack.c.b16 %v881, %v881
          %v914 = vpack.c.b16 %v882, %v882
          %v915 = vpack.c.b16 %v883, %v883
          %v916 = vpack.c.b16 %v884, %v884
          %v917 = vpack.c.b16 %v885, %v885
          %v918 = vpack.c.b16 %v886, %v886
          %v919 = vpack.c.b16 %v887, %v887
          %v920 = vpack.c.b16 %v888, %v888
          %v921 = vpack.c.b16 %v889, %v889
          %v922 = vpack.c.b16 %v890, %v890
          %v923 = vpack.c.b16 %v891, %v891
          %v924 = vpack.c.b16 %v892, %v892
          %v925 = vpack.c.b16 %v893, %v893
          %v926 = vpack.c.b16 %v894, %v894
          %v927 = vpack.c.b16 %v895, %v895
          %v928 = vpack.c.b16 %v896, %v896
          %v929 = vpack.c.b16 %v897, %v897
          %v930 = vpack.c.b16 %v898, %v898
          %v931 = vpack.c.b16 %v899, %v899
          %v932 = vpack.c.b16 %v900, %v900
          %v933 = vpack.c.b16 %v901, %v901
          %966 = vst [vmem:[%s243] sm:$0xf] %v902
          %967 = vst [vmem:[%s243 + $0x4] sm:$0xf] %v903
          %968 = vst [vmem:[%s243 + $0x8] sm:$0xf] %v904
          %969 = vst [vmem:[%s243 + $0xc] sm:$0xf] %v905
          %970 = vst [vmem:[%s243 + $0x10] sm:$0xf] %v906
          %971 = vst [vmem:[%s243 + $0x14] sm:$0xf] %v907
          %972 = vst [vmem:[%s243 + $0x18] sm:$0xf] %v908
          %973 = vst [vmem:[%s243 + $0x1c] sm:$0xf] %v909
          %974 = vst [vmem:[%s243 + $0x20] sm:$0xf] %v910
          %975 = vst [vmem:[%s243 + $0x24] sm:$0xf] %v911
          %976 = vst [vmem:[%s243 + $0x28] sm:$0xf] %v912
          %977 = vst [vmem:[%s243 + $0x2c] sm:$0xf] %v913
          %978 = vst [vmem:[%s243 + $0x30] sm:$0xf] %v914
          %979 = vst [vmem:[%s243 + $0x34] sm:$0xf] %v915
          %980 = vst [vmem:[%s243 + $0x38] sm:$0xf] %v916
          %981 = vst [vmem:[%s243 + $0x3c] sm:$0xf] %v917
          %982 = vst [vmem:[%s243 + $0x40] sm:$0xf] %v918
          %983 = vst [vmem:[%s243 + $0x44] sm:$0xf] %v919
          %984 = vst [vmem:[%s243 + $0x48] sm:$0xf] %v920
          %985 = vst [vmem:[%s243 + $0x4c] sm:$0xf] %v921
          %986 = vst [vmem:[%s243 + $0x50] sm:$0xf] %v922
          %987 = vst [vmem:[%s243 + $0x54] sm:$0xf] %v923
          %988 = vst [vmem:[%s243 + $0x58] sm:$0xf] %v924
          %989 = vst [vmem:[%s243 + $0x5c] sm:$0xf] %v925
          %990 = vst [vmem:[%s243 + $0x60] sm:$0xf] %v926
          %991 = vst [vmem:[%s243 + $0x64] sm:$0xf] %v927
          %992 = vst [vmem:[%s243 + $0x68] sm:$0xf] %v928
          %993 = vst [vmem:[%s243 + $0x6c] sm:$0xf] %v929
          %994 = vst [vmem:[%s243 + $0x70] sm:$0xf] %v930
          %995 = vst [vmem:[%s243 + $0x74] sm:$0xf] %v931
          %996 = vst [vmem:[%s243 + $0x78] sm:$0xf] %v932
          %997 = vst [vmem:[%s243 + $0x7c] sm:$0xf] %v933
        $region52: #{tpu_custom_call.1} parent=31 // pred_fallthru
          _
        %s998 = sand.u32 %s122, 1
        %s999 = scalar_lea.sflag [#allocation5], %s998
        %s1000 = sand.u32 %s122, 1
        %s1001 = smul.addr %s1000, 128
        %s1002 = scalar_lea.vmem [#allocation9], %s1001
        // Predicated region
        $region53: #{tpu_custom_call.1} parent=31 // pred_check
          %p1003 = pneg %p132
        $region54: #{tpu_custom_call.1} parent=31 // pred_check_branch
          %1005 = sbr.rel (%p1003) target = $region56
        $region55: #{tpu_custom_call.1} parent=31 // pred_region
          %s1006 = smul.u32 32, %s27
          %s1008 = ssub.s32 2048, 2048
          %1009 = vsyncadd %s999, %s1008
          %s1010 = smul.addr %s26, 32
          %s1011 = sadd.s32 %s1006, %s1010
          %s1012 = smul.addr %s1011, 64
          %s1013 = scalar_lea.hbm %s3, %s1012
          %s1014 = sshll.u32 %s1002, 4
          %s1015 = int_to_ptr.vmem [resolvable:$true] %s1014
          %1020 = dma.vmem_to_hbm [thread:$0]  %s1015, 2048, %s1013, %s999, 64, 64, 4
        $region56: #{tpu_custom_call.1} parent=31 // pred_fallthru
          _
      $region32: #{tpu_custom_call.1} parent=5 // pred_fallthru
        _
      %p1021 = scmp.le.s32.totalorder 2, %s16
      // Predicated region
      $region57: #{tpu_custom_call.1} parent=5 // pred_check
        %p1022 = pneg %p1021
      $region58: #{tpu_custom_call.1} parent=5 // pred_check_branch
        %1024 = sbr.rel (%p1022) target = $region60
      $region59: #{tpu_custom_call.1} parent=5 // pred_region
        %s1025 = ssub.s32 %s16, 2
        // Predicated region
        $region61: #{tpu_custom_call.1} parent=59 // pred_check
          %p1026 = pneg %p138
        $region62: #{tpu_custom_call.1} parent=59 // pred_check_branch
          %1028 = sbr.rel (%p1026) target = $region64
        $region63: #{tpu_custom_call.1} parent=59 // pred_region
          %s1029 = sand.u32 %s123, 1
          %s1030 = scalar_lea.sflag [#allocation5], %s1029
          %s1031 = sand.u32 %s123, 1
          %s1032 = smul.addr %s1031, 128
          %s1033 = scalar_lea.vmem [#allocation9], %s1032
          %1034 = dma.done %s1030, 2048
        $region64: #{tpu_custom_call.1} parent=59 // pred_fallthru
          _
      $region60: #{tpu_custom_call.1} parent=5 // pred_fallthru
        _
    $region6: #{tpu_custom_call.1} parent=1 // loop_footer
      %s20 = sadd.s32 1, %s16
    $region7: #{tpu_custom_call.1} parent=1 // loop_footer_branch
      %15 = sbr.rel target = $region3
    $region8: #{tpu_custom_call.1} parent=1 // loop_exit
      _
    %1035 = vsyncpa [#allocation4], 1
    %s1036 = scalar_lea.sflag [#allocation4], 1
    %1037 = vsyncpa %s1036, 1
    %1038 = vsyncpa [#allocation7], 1
    %1039 = vsyncpa [#allocation5], 1
    %s1040 = scalar_lea.sflag [#allocation5], 1
    %1041 = vsyncpa %s1040, 1

</llo_original>
